<compile_context>
chip_gen: v5e
topology: v5e:2x2
jax: 0.10.0
libtpu: 0.0.40
codegen_flags: <defaults>
</compile_context>

<pallas_src>
import functools

import jax
import jax.numpy as jnp
import numpy as np
from jax.experimental import pallas as pl
from jax.experimental.pallas import tpu as pltpu


def _round_up(n, m):
    return ((n + m - 1) // m) * m


def _center_loss_kernel(labels_ref, x_ref, centers_hbm, dist_ref, gath, sem, *, tb):
    """Grid = (num_batch_tiles,).

    labels_ref  : SMEM (Bp,) int32           (scalar-prefetched labels)
    x_ref       : VMEM (tb, F)               (auto-pipelined features)
    centers_hbm : HBM  (C, F)                (memory_space=pl.ANY, gathered manually)
    dist_ref    : VMEM (tb, 1) float32       per-sample clamped squared distance
    gath        : VMEM (tb, F) scratch for the gathered center rows
    sem         : DMA semaphore shared by all row-gather copies (same size -> safe)
    """
    b = pl.program_id(0)
    base = b * tb

    # 1) Kick off one row-gather DMA per sample in this batch tile (all in flight).
    @pl.loop(0, tb)
    def _issue(i):
        lbl = labels_ref[base + i]
        pltpu.make_async_copy(
            centers_hbm.at[pl.ds(lbl, 1)], gath.at[pl.ds(i, 1)], sem
        ).start()

    # 2) VPU work that does not need the centers overlaps with the gather DMAs.
    xf = x_ref[...].astype(jnp.float32)                      # (tb, F)
    x2 = jnp.sum(xf * xf, axis=1, keepdims=True)             # (tb, 1)

    # 3) Drain all gather DMAs (every copy has the same size, so tb waits on the
    #    shared semaphore complete exactly when all copies have landed).
    @pl.loop(0, tb)
    def _drain(i):
        pltpu.make_async_copy(
            centers_hbm.at[pl.ds(0, 1)], gath.at[pl.ds(i, 1)], sem
        ).wait()

    # 4) ||x_i - c_{label_i}||^2 = ||x_i||^2 + ||c||^2 - 2 x_i.c, clamped like PyTorch.
    gf = gath[...].astype(jnp.float32)                       # (tb, F)
    per = x2 + jnp.sum(gf * gf - 2.0 * xf * gf, axis=1, keepdims=True)
    dist_ref[...] = jnp.clip(per, 1e-12, 1e12)


def center_loss(x, labels, centers, *, batch_tile=256):
    """loss = mean_i clamp(||x_i - centers[labels[i]]||^2, 1e-12, 1e12)."""
    B, F = x.shape
    C, F2 = centers.shape
    assert F == F2, "feature dim mismatch between x and centers"

    # Batch tile: multiple of 8 sublanes; pad the batch so it divides evenly.
    tb = min(batch_tile, _round_up(B, 8))
    Bp = _round_up(B, tb)
    nb = Bp // tb

    labels_i32 = labels.astype(jnp.int32)
    if Bp != B:
        x = jnp.pad(x, ((0, Bp - B), (0, 0)))
        labels_i32 = jnp.pad(labels_i32, (0, Bp - B))   # label 0 = valid gather index

    kernel = functools.partial(_center_loss_kernel, tb=tb)

    dist = pl.pallas_call(
        kernel,
        out_shape=jax.ShapeDtypeStruct((Bp, 1), jnp.float32),
        grid_spec=pltpu.PrefetchScalarGridSpec(
            num_scalar_prefetch=1,                       # labels -> SMEM
            grid=(nb,),
            in_specs=[
                pl.BlockSpec((tb, F), lambda b, labels: (b, 0)),   # features
                pl.BlockSpec(memory_space=pl.ANY),                 # centers stay in HBM
            ],
            out_specs=pl.BlockSpec((tb, 1), lambda b, labels: (b, 0)),
            scratch_shapes=[
                pltpu.VMEM((tb, F), centers.dtype),      # gathered center rows
                pltpu.SemaphoreType.DMA(()),             # shared gather semaphore
            ],
        ),
        compiler_params=pltpu.CompilerParams(
            dimension_semantics=("parallel",),           # megacore-shardable on v7x
        ),
    )(labels_i32, x, centers)

    # Tiny final reduction; PyTorch divides by batch_size (labels always hit).
    return jnp.sum(dist[:B, 0]) / B


def center_loss_ref(x, labels, centers):
    """Pure-JAX reference mirroring the PyTorch module."""
    B = x.shape[0]
    distmat = (jnp.sum(x * x, axis=1, keepdims=True)
               + jnp.sum(centers * centers, axis=1)[None, :]
               - 2.0 * (x @ centers.T))
    picked = distmat[jnp.arange(B), labels]
    picked = jnp.clip(picked, 1e-12, 1e12)
    return jnp.mean(picked)


if __name__ == "__main__":
    # Small deterministic setup consistent with CenterLoss.__init__
    B, F = 8, 64
    num_classes = 128

    key = jax.random.PRNGKey(0)
    kx, kc, kl = jax.random.split(key, 3)

    x = jax.random.normal(kx, (B, F), dtype=jnp.float32)
    centers = jax.random.normal(kc, (num_classes, F), dtype=jnp.float32)  # nn.Parameter(randn)
    labels = jax.random.randint(kl, (B,), 0, num_classes, dtype=jnp.int32)

    loss = center_loss(x, labels, centers)
    jax.block_until_ready(loss)

    ref = center_loss_ref(x, labels, centers)
    np.testing.assert_allclose(np.asarray(loss), np.asarray(ref), rtol=1e-4, atol=1e-5)

    # TODO(synk): the `centers` nn.Parameter is updated by the outer optimizer
    # (backward pass), which is training-time state and not part of this forward kernel.
    print("KERNEL_OK")
</pallas_src>

<mosaic_0001>
module attributes {stable_mosaic.version = 11 : i64} {
  func.func @_center_loss_kernel(%arg0: i32, %arg1: memref<8xi32, #tpu.memory_space<smem>>, %arg2: memref<8x64xf32, #tpu.memory_space<vmem>>, %arg3: memref<128x64xf32, #tpu.memory_space<any>>, %arg4: memref<8x1xf32, #tpu.memory_space<vmem>>, %arg5: memref<8x64xf32, #tpu.memory_space<vmem>>, %arg6: memref<!tpu.dma_semaphore, #tpu.memory_space<semaphore_mem>>) attributes {dimension_semantics = [#tpu.dimension_semantics<parallel>], iteration_bounds = array<i64: 1>, scalar_prefetch = 1 : i64, scratch_operands = 2 : i64, tpu.core_type = #tpu.core_type<tc>, window_params = [{transform_indices = @transform_0, window_bounds = array<i64: 8, 64>}, {}, {transform_indices = @transform_2, window_bounds = array<i64: 8, 1>}]} {
    %c8_i32 = arith.constant 8 : i32
    %0 = arith.muli %arg0, %c8_i32 : i32
    %c0_i32 = arith.constant 0 : i32
    %c8_i32_0 = arith.constant 8 : i32
    %1 = arith.addi %c0_i32, %c8_i32_0 : i32
    %c1_i32 = arith.constant 1 : i32
    scf.for %arg7 = %c0_i32 to %1 step %c1_i32  : i32 {
      %c1_i32_15 = arith.constant 1 : i32
      %21 = arith.muli %arg7, %c1_i32_15 : i32
      %c0_i32_16 = arith.constant 0 : i32
      %22 = arith.addi %c0_i32_16, %21 : i32
      %23 = arith.addi %0, %22 : i32
      %24 = arith.index_cast %23 : i32 to index
      %25 = memref.load %arg1[%24] : memref<8xi32, #tpu.memory_space<smem>>
      %c0_i32_17 = arith.constant 0 : i32
      %26 = tpu.memref_slice %arg3[%25, %c0_i32_17] : memref<128x64xf32, #tpu.memory_space<any>> -> memref<1x64xf32, #tpu.memory_space<any>>
      %c0_i32_18 = arith.constant 0 : i32
      %27 = tpu.memref_slice %arg5[%22, %c0_i32_18] : memref<8x64xf32, #tpu.memory_space<vmem>> -> memref<1x64xf32, #tpu.memory_space<vmem>>
      tpu.enqueue_dma source(%26 : memref<1x64xf32, #tpu.memory_space<any>>) target(%27 : memref<1x64xf32, #tpu.memory_space<vmem>>) target_semaphore(%arg6 : memref<!tpu.dma_semaphore, #tpu.memory_space<semaphore_mem>>)
    }
    %c8_i32_1 = arith.constant 8 : i32
    %c0 = arith.constant 0 : index
    %c0_2 = arith.constant 0 : index
    %2 = vector.load %arg2[%c0, %c0_2] : memref<8x64xf32, #tpu.memory_space<vmem>>, vector<8x64xf32>
    %3 = arith.mulf %2, %2 : vector<8x64xf32>
    %cst = arith.constant dense<0.000000e+00> : vector<8xf32>
    %4 = vector.multi_reduction <add>, %3, %cst [1] : vector<8x64xf32> to vector<8xf32>
    %5 = vector.shape_cast %4 : vector<8xf32> to vector<8x1xf32>
    %c0_i32_3 = arith.constant 0 : i32
    %c8_i32_4 = arith.constant 8 : i32
    %6 = arith.addi %c0_i32_3, %c8_i32_4 : i32
    %c1_i32_5 = arith.constant 1 : i32
    scf.for %arg7 = %c0_i32_3 to %6 step %c1_i32_5  : i32 {
      %c1_i32_15 = arith.constant 1 : i32
      %21 = arith.muli %arg7, %c1_i32_15 : i32
      %c0_i32_16 = arith.constant 0 : i32
      %22 = arith.addi %c0_i32_16, %21 : i32
      %c0_i32_17 = arith.constant 0 : i32
      %c0_i32_18 = arith.constant 0 : i32
      %23 = tpu.memref_slice %arg3[%c0_i32_17, %c0_i32_18] : memref<128x64xf32, #tpu.memory_space<any>> -> memref<1x64xf32, #tpu.memory_space<any>>
      %c0_i32_19 = arith.constant 0 : i32
      %24 = tpu.memref_slice %arg5[%22, %c0_i32_19] : memref<8x64xf32, #tpu.memory_space<vmem>> -> memref<1x64xf32, #tpu.memory_space<vmem>>
      tpu.wait_dma2 semaphore(%arg6 : memref<!tpu.dma_semaphore, #tpu.memory_space<semaphore_mem>>) src(%23 : memref<1x64xf32, #tpu.memory_space<any>>) dst(%24 : memref<1x64xf32, #tpu.memory_space<vmem>>)
    }
    %c8_i32_6 = arith.constant 8 : i32
    %c0_7 = arith.constant 0 : index
    %c0_8 = arith.constant 0 : index
    %7 = vector.load %arg5[%c0_7, %c0_8] : memref<8x64xf32, #tpu.memory_space<vmem>>, vector<8x64xf32>
    %8 = arith.mulf %7, %7 : vector<8x64xf32>
    %cst_9 = arith.constant 2.000000e+00 : f32
    %9 = vector.broadcast %cst_9 : f32 to vector<8x64xf32>
    %10 = arith.mulf %9, %2 : vector<8x64xf32>
    %11 = arith.mulf %10, %7 : vector<8x64xf32>
    %12 = arith.subf %8, %11 : vector<8x64xf32>
    %cst_10 = arith.constant dense<0.000000e+00> : vector<8xf32>
    %13 = vector.multi_reduction <add>, %12, %cst_10 [1] : vector<8x64xf32> to vector<8xf32>
    %14 = vector.shape_cast %13 : vector<8xf32> to vector<8x1xf32>
    %15 = arith.addf %5, %14 : vector<8x1xf32>
    %cst_11 = arith.constant 9.99999996E-13 : f32
    %cst_12 = arith.constant 9.99999995E+11 : f32
    %16 = vector.broadcast %cst_11 : f32 to vector<8x1xf32>
    %17 = arith.maximumf %16, %15 : vector<8x1xf32>
    %18 = vector.broadcast %cst_12 : f32 to vector<8x1xf32>
    %19 = arith.minimumf %18, %17 : vector<8x1xf32>
    %c0_13 = arith.constant 0 : index
    %c0_14 = arith.constant 0 : index
    %20 = vector.load %arg4[%c0_13, %c0_14] : memref<8x1xf32, #tpu.memory_space<vmem>>, vector<8x1xf32>
    tpu.vector_store %arg4[%c0_13, %c0_14], %19 {strides = array<i32>} : memref<8x1xf32, #tpu.memory_space<vmem>>, vector<8x1xf32>,
    return
  }
  func.func @transform_0(%arg0: i32, %arg1: memref<8xi32, #tpu.memory_space<smem>>) -> (i32, i32) {
    %c0_i32 = arith.constant 0 : i32
    %c0_i32_0 = arith.constant 0 : i32
    return %arg0, %c0_i32 : i32, i32
  }
  func.func @transform_2(%arg0: i32, %arg1: memref<8xi32, #tpu.memory_space<smem>>) -> (i32, i32) {
    %c0_i32 = arith.constant 0 : i32
    %c0_i32_0 = arith.constant 0 : i32
    return %arg0, %c0_i32 : i32, i32
  }
}

</mosaic_0001>

<llo_original>
// kernel: tpu_custom_call.1
$region0: #{tpu_custom_call.1}
  #allocation0 [shape = 'u32[]', space=smem, size = 0x4, offset = 0x4, fixed_abs, tag = 'smem constant byte address 0x4 - core index']
  #allocation1 [shape = 'u32[72,128]{1,0:T(1,128)}', space=vmem, size = 0x9000, scoped, tag = 'internal scratch']
  #allocation2 [shape = 'f32[8,64]{1,0:T(8,128)}', space=vmem, size = 0x1000, scoped, tag = 'scratch operand']
  #allocation3 [shape = 's32[1]{0}', space=sflag, size = 0x4, scoped, tag = 'scratch operand']
  #allocation4 [shape = 's32[1]{0}', space=sflag, size = 0x4, scoped, tag = 'scoped memory for tpu_custom_call.1']
  #allocation5 [shape = 'u8[512]{0}', space=smem, size = 0x200, scoped, tag = 'prefetched SMEM operand 0']
  #allocation6 [shape = 's32[]', space=sflag, size = 0x4, offset = 0, fixed_abs, tag = 'sflag constant byte address 0x0 - dummy sync flag']
  %s0 = inlined_call_operand.vmem [shape: s32[8], index: 0, kind: input, shape index: {}]
  %s1 = inlined_call_operand.vmem [shape: f32[8,64], index: 1, kind: input, shape index: {}]
  %s2 = inlined_call_operand.vmem [shape: f32[128,64], index: 2, kind: input, shape index: {}]
  %s3 = inlined_call_operand.vmem [shape: f32[8,1], index: 3, kind: output, shape index: {}]
  %s4 = sld [smem:[#allocation0]]
  $region58: #{tpu_custom_call.1} parent=0
    _
  %s6 = ssub.s32 1, %s4
  %s7 = scalar_select 0, %s6, %s4
  %s9 = sshll.u32 %s0, 4
  %s10 = int_to_ptr.vmem [resolvable:$true] %s9
  %12 = dma.vmem_to_smem %s10, 16, [#allocation5], [#allocation4]
  %14 = dma.done [#allocation4], 16
  %15 = sfence
  // Predicated region
  $region2: #{tpu_custom_call.1} parent=0 // pred_check
    _
  $region3: #{tpu_custom_call.1} parent=0 // pred_check_branch
    %17 = sbr.rel (0) target = $region5
  $region4: #{tpu_custom_call.1} parent=0 // pred_region
    _
  $region5: #{tpu_custom_call.1} parent=0 // pred_fallthru
    _
  %s18 = smul.u32 0, 8
  loop: start=0, step=1, limit=8
  $region6: #{tpu_custom_call.1} parent=0 // loop_pre_header
    _
  $region7: #{tpu_custom_call.1} parent=0 // loop_header
    %s20 = sphi 0, %s24
    %p21 = scmp.ge.s32.totalorder %s20, 8
  $region8: #{tpu_custom_call.1} parent=0 // loop_header_branch
    %23 = sbr.rel (%p21) target = $region12
  $region9: #{tpu_custom_call.1} parent=0 // loop_body
    %s25 = sadd.s32 %s18, %s20
    %s26 = sld [smem:[#allocation5 + %s25]]
    %s27 = scalar_lea.vmem %s2, %s26
    %s28 = scalar_lea.vmem [#allocation2], %s20
    // Predicated region
    $region13: #{tpu_custom_call.1} parent=9 // pred_check
      _
    $region14: #{tpu_custom_call.1} parent=9 // pred_check_branch
      %30 = sbr.rel target = $region16
    $region15: #{tpu_custom_call.1} parent=9 // pred_region
      // Predicated region
      $region28: #{tpu_custom_call.1} parent=15 // pred_check
        _
      $region29: #{tpu_custom_call.1} parent=15 // pred_check_branch
        %46 = sbr.rel (0) target = $region31
      $region30: #{tpu_custom_call.1} parent=15 // pred_region
        %s48 = ssub.s32 2, 1
        loop: start=0, step=1, limit=1
        $region32: #{tpu_custom_call.1} parent=30 // loop_pre_header
          _
        $region33: #{tpu_custom_call.1} parent=30 // loop_header
          %s50 = sphi 0, %s54
          %p51 = scmp.ge.s32.totalorder %s50, 1
          %s55 = sphi %s27, %s27
          %s56 = sphi %s28, %s28
        $region34: #{tpu_custom_call.1} parent=30 // loop_header_branch
          %53 = sbr.rel (%p51) target = $region38
        $region35: #{tpu_custom_call.1} parent=30 // loop_body
          %v57 = vld [vmem:[%s55] sm:%s48]
          %58 = vst [vmem:[%s56] sm:%s48] %v57
        $region36: #{tpu_custom_call.1} parent=30 // loop_footer
          %s54 = sadd.s32 1, %s50
        $region37: #{tpu_custom_call.1} parent=30 // loop_footer_branch
          %49 = sbr.rel target = $region33
        $region38: #{tpu_custom_call.1} parent=30 // loop_exit
          _
      $region31: #{tpu_custom_call.1} parent=15 // pred_fallthru
        _
    $region16: #{tpu_custom_call.1} parent=9 // pred_fallthru
      _
    // Predicated region
    $region17: #{tpu_custom_call.1} parent=9 // pred_check
      _
    $region18: #{tpu_custom_call.1} parent=9 // pred_check_branch
      %32 = sbr.rel (0) target = $region20
    $region19: #{tpu_custom_call.1} parent=9 // pred_region
      %s34 = ssub.s32 2, 1
      loop: start=0, step=1, limit=1
      $region21: #{tpu_custom_call.1} parent=19 // loop_pre_header
        _
      $region22: #{tpu_custom_call.1} parent=19 // loop_header
        %s36 = sphi 0, %s40
        %p37 = scmp.ge.s32.totalorder %s36, 1
        %s41 = sphi %s27, %s27
        %s42 = sphi %s28, %s28
      $region23: #{tpu_custom_call.1} parent=19 // loop_header_branch
        %39 = sbr.rel (%p37) target = $region27
      $region24: #{tpu_custom_call.1} parent=19 // loop_body
        %v43 = vld [vmem:[%s41] sm:%s34]
        %44 = vst [vmem:[%s42] sm:%s34] %v43
      $region25: #{tpu_custom_call.1} parent=19 // loop_footer
        %s40 = sadd.s32 1, %s36
      $region26: #{tpu_custom_call.1} parent=19 // loop_footer_branch
        %35 = sbr.rel target = $region22
      $region27: #{tpu_custom_call.1} parent=19 // loop_exit
        _
    $region20: #{tpu_custom_call.1} parent=9 // pred_fallthru
      _
    // Predicated region
    $region39: #{tpu_custom_call.1} parent=9 // pred_check
      _
    $region40: #{tpu_custom_call.1} parent=9 // pred_check_branch
      %61 = sbr.rel (0) target = $region42
    $region41: #{tpu_custom_call.1} parent=9 // pred_region
      %62 = vsyncadd [#allocation3], 16
    $region42: #{tpu_custom_call.1} parent=9 // pred_fallthru
      _
  $region10: #{tpu_custom_call.1} parent=0 // loop_footer
    %s24 = sadd.s32 1, %s20
  $region11: #{tpu_custom_call.1} parent=0 // loop_footer_branch
    %19 = sbr.rel target = $region7
  $region12: #{tpu_custom_call.1} parent=0 // loop_exit
    _
  %v63 = vld [vmem:[%s1] sm:$0xff]
  %v64 = vmul.f32 %v63, %v63
  %vm65 = vcmask 523264
  %v66 = vsel %vm65, %v64, 0.0
  %67 = vadd.xlane.f32.xlu0 %v66
  %v68 = vpop.xlane.xlu0 %67
  loop: start=0, step=1, limit=8
  $region43: #{tpu_custom_call.1} parent=0 // loop_pre_header
    _
  $region44: #{tpu_custom_call.1} parent=0 // loop_header
    %s70 = sphi 0, %s74
    %p71 = scmp.ge.s32.totalorder %s70, 8
  $region45: #{tpu_custom_call.1} parent=0 // loop_header_branch
    %73 = sbr.rel (%p71) target = $region49
  $region46: #{tpu_custom_call.1} parent=0 // loop_body
    %s75 = smul.u32 1, 1
    %s76 = sshll.u32 %s75, 4
    %77 = dma.done [#allocation3], %s76
  $region47: #{tpu_custom_call.1} parent=0 // loop_footer
    %s74 = sadd.s32 1, %s70
  $region48: #{tpu_custom_call.1} parent=0 // loop_footer_branch
    %69 = sbr.rel target = $region44
  $region49: #{tpu_custom_call.1} parent=0 // loop_exit
    _
  %v78 = vld [vmem:[#allocation2] sm:$0xff]
  %v79 = vmul.f32 %v78, %v78
  %v80 = vmul.f32 %v63, 2.0
  %v81 = vmul.f32 %v80, %v78
  %v82 = vsub.f32 %v79, %v81
  %v83 = vsel %vm65, %v82, 0.0
  %84 = vadd.xlane.f32.xlu0 %v83
  %v85 = vpop.xlane.xlu0 %84
  %v86 = vadd.f32 %v68, %v85
  %v87 = vmax.f32 %v86, 1e-12
  %v88 = vmin.f32 %v87, 1e+12
  %vm89 = vcmask 7168
  %90 = vst.msk [vmem:[%s3] sm:$0xff] %vm89, %v88
  // Predicated region
  $region50: #{tpu_custom_call.1} parent=0 // pred_check
    _
  $region51: #{tpu_custom_call.1} parent=0 // pred_check_branch
    %92 = sbr.rel (0) target = $region53
  $region52: #{tpu_custom_call.1} parent=0 // pred_region
    _
  $region53: #{tpu_custom_call.1} parent=0 // pred_fallthru
    _
  // Predicated region
  $region54: #{tpu_custom_call.1} parent=0 // pred_check
    _
  $region55: #{tpu_custom_call.1} parent=0 // pred_check_branch
    %94 = sbr.rel (0) target = $region57
  $region56: #{tpu_custom_call.1} parent=0 // pred_region
    _
  $region57: #{tpu_custom_call.1} parent=0 // pred_fallthru
    _
  %95 = vsyncmov [#allocation3]
  %s96 = vpop.sfrf %95
  %p97 = scmp.eq.s32.totalorder %s96, 0
  %p98 = pneg %p97
  %100 = shalt.err (%p98)

</llo_original>
